<compile_context>
chip_gen: v7x
topology: tpu7x:2x2x1
jax: 0.10.0
libtpu: 0.0.40
codegen_flags: <defaults>
</compile_context>

<pallas_src>
import functools
import math

import jax
import jax.numpy as jnp
import numpy as np
from jax.experimental import pallas as pl
from jax.experimental.pallas import tpu as pltpu

_LRELU = 0.1
_LANE = 128   # TPU lane width
_SUB = 8      # fp32 sublane tile
_TM = 256     # spatial (M) tile for all matmul-style kernels


def _round_up(x, m):
    return ((x + m - 1) // m) * m


@functools.lru_cache(maxsize=1)
def _vmem_limit_bytes():
    """Generation-aware scoped-VMEM limit (v7x only has 64 MiB physical VMEM)."""
    try:
        cap = int(pltpu.get_tpu_info().vmem_capacity_bytes)
    except Exception:
        cap = 64 * 1024 * 1024
    return max(32 * 1024 * 1024, min(cap * 3 // 4, 96 * 1024 * 1024))


# ---------------------------------------------------------------------------
# Pallas kernels
# ---------------------------------------------------------------------------
def _conv_flat_kernel(x_ref, w_ref, b_ref, o_ref, *, shifts, tm, lrelu):
    """Fused stride-1 conv: accumulate kh*kw flat-shifted (tm, Cin)@(Cin, Np) matmuls.

    x_ref : (L, Cin)  fp32, the whole padded+flattened activation of one image.
    w_ref : (T, Cin, Np) bf16 per-tap matmul weights (Np = Cout padded to 128).
    b_ref : (1, Np) fp32 bias.  o_ref : (tm, Np) fp32 output tile.
    """
    m0 = pl.multiple_of(pl.program_id(1) * tm, tm)
    acc = jnp.zeros(o_ref.shape, jnp.float32)
    for t, sh in enumerate(shifts):
        # keep the dynamic slice start sublane-aligned; absorb sh % 8 with a
        # static sub-slice of the loaded value.
        base = pl.multiple_of(m0 + (sh // _SUB) * _SUB, _SUB)
        off = sh % _SUB
        a = x_ref[pl.ds(base, tm + _SUB), :]
        a = a[off:off + tm, :].astype(jnp.bfloat16)
        acc = acc + jnp.dot(a, w_ref[t], preferred_element_type=jnp.float32)
    acc = acc + b_ref[...]
    if lrelu:
        acc = jnp.where(acc >= 0.0, acc, acc * _LRELU)
    o_ref[...] = acc


def _matmul_bias_kernel(a_ref, w_ref, b_ref, o_ref, *, lrelu):
    a = a_ref[...].astype(jnp.bfloat16)
    acc = jnp.dot(a, w_ref[...], preferred_element_type=jnp.float32)
    acc = acc + b_ref[...]
    if lrelu:
        acc = jnp.where(acc >= 0.0, acc, acc * _LRELU)
    o_ref[...] = acc


def _corr_kernel(x1_ref, x2_ref, o_ref, *, shifts, tm, inv_c):
    """Cost volume: 81 displacements generated from the VMEM-resident padded x2."""
    m0 = pl.multiple_of(pl.program_id(1) * tm, tm)
    x1 = x1_ref[...]                                             # (tm, C) fp32
    lane = jax.lax.broadcasted_iota(jnp.int32, (tm, o_ref.shape[-1]), 1)
    acc = jnp.zeros(o_ref.shape, jnp.float32)
    for t, sh in enumerate(shifts):
        base = pl.multiple_of(m0 + (sh // _SUB) * _SUB, _SUB)
        off = sh % _SUB
        x2 = x2_ref[pl.ds(base, tm + _SUB), :]
        x2 = x2[off:off + tm, :]
        s = jnp.sum(x1 * x2, axis=-1, keepdims=True) * inv_c     # (tm, 1)
        acc = jnp.where(lane == t, s, acc)
    o_ref[...] = jnp.where(acc >= 0.0, acc, acc * _LRELU)


# ---------------------------------------------------------------------------
# Convolution wrappers
# ---------------------------------------------------------------------------
def _conv2d_s1_pallas(x, weight, bias, *, dilation, pads, lrelu, tm=_TM):
    """Stride-1 conv (asymmetric padding, dilation), NHWC, fused Pallas kernel."""
    B, H, W, Cin = x.shape
    Cout, _, kh, kw = weight.shape
    pt, pb, pleft, pright = pads
    Wrow = W + pleft + pright
    Ho = H + pt + pb - dilation * (kh - 1)
    Wo = Wrow - dilation * (kw - 1)
    M = Ho * Wrow
    Mp = _round_up(max(M, 1), tm)
    shifts = tuple(ky * dilation * Wrow + kx * dilation
                   for ky in range(kh) for kx in range(kw))
    max_shift = max(shifts)
    L = Mp + _round_up(max_shift, _SUB) + _SUB

    # padded + flattened activation; zero tail keeps every in-kernel slice in bounds
    xp = jnp.pad(x, ((0, 0), (pt, pb), (pleft, pright), (0, 0)))
    xf = xp.reshape(B, (H + pt + pb) * Wrow, Cin)
    xf = jnp.pad(xf, ((0, 0), (0, L - xf.shape[1]), (0, 0)))

    Np = _round_up(Cout, _LANE)                       # lane-dense output width
    wm = jnp.transpose(weight, (2, 3, 1, 0)).reshape(kh * kw, Cin, Cout)
    wm = jnp.pad(wm, ((0, 0), (0, 0), (0, Np - Cout))).astype(jnp.bfloat16)
    bm = jnp.pad(bias, (0, Np - Cout)).reshape(1, Np).astype(jnp.float32)

    out = pl.pallas_call(
        functools.partial(_conv_flat_kernel, shifts=shifts, tm=tm, lrelu=lrelu),
        out_shape=jax.ShapeDtypeStruct((B, Mp, Np), jnp.float32),
        grid=(B, Mp // tm),
        in_specs=[
            pl.BlockSpec((None, L, Cin), lambda b, i: (b, 0, 0)),
            pl.BlockSpec((kh * kw, Cin, Np), lambda b, i: (0, 0, 0)),
            pl.BlockSpec((1, Np), lambda b, i: (0, 0)),
        ],
        out_specs=pl.BlockSpec((None, tm, Np), lambda b, i: (b, i, 0)),
        compiler_params=pltpu.CompilerParams(
            dimension_semantics=("parallel", "parallel"),
            vmem_limit_bytes=_vmem_limit_bytes(),
        ),
    )(xf, wm, bm)
    out = out[:, :M, :].reshape(B, Ho, Wrow, Np)
    return out[:, :, :Wo, :Cout]


def _matmul_bias(a, w_bf16, b, *, lrelu, tm=_TM):
    """(M, K) fp32 @ (K, Np) bf16 + bias, optional LeakyReLU; grid over M tiles."""
    M, K = a.shape
    _, Np = w_bf16.shape
    Mp = _round_up(max(M, 1), tm)
    if Mp != M:
        a = jnp.pad(a, ((0, Mp - M), (0, 0)))
    out = pl.pallas_call(
        functools.partial(_matmul_bias_kernel, lrelu=lrelu),
        out_shape=jax.ShapeDtypeStruct((Mp, Np), jnp.float32),
        grid=(Mp // tm,),
        in_specs=[
            pl.BlockSpec((tm, K), lambda i: (i, 0)),
            pl.BlockSpec((K, Np), lambda i: (0, 0)),
            pl.BlockSpec((1, Np), lambda i: (0, 0)),
        ],
        out_specs=pl.BlockSpec((tm, Np), lambda i: (i, 0)),
        compiler_params=pltpu.CompilerParams(
            dimension_semantics=("parallel",),
            vmem_limit_bytes=_vmem_limit_bytes(),
        ),
    )(a, w_bf16, b)
    return out[:M]


def _conv2d_im2col(x, weight, bias, *, stride, pads, dilation, lrelu):
    """im2col fallback (used only for the few stride-2 extractor convs, or for
    activations too large to keep resident in VMEM)."""
    B, H, W, Cin = x.shape
    Cout, _, kh, kw = weight.shape
    pt, pb, pleft, pright = pads
    xp = jnp.pad(x, ((0, 0), (pt, pb), (pleft, pright), (0, 0)))
    Ho = (H + pt + pb - dilation * (kh - 1) - 1) // stride + 1
    Wo = (W + pleft + pright - dilation * (kw - 1) - 1) // stride + 1
    cols = []
    for ky in range(kh):
        for kx in range(kw):
            y0 = ky * dilation
            x0 = kx * dilation
            cols.append(xp[:, y0:y0 + stride * (Ho - 1) + 1:stride,
                           x0:x0 + stride * (Wo - 1) + 1:stride, :])
    a = jnp.concatenate(cols, axis=-1).reshape(B * Ho * Wo, kh * kw * Cin)
    Np = _round_up(Cout, _LANE)
    wmat = jnp.transpose(weight, (2, 3, 1, 0)).reshape(kh * kw * Cin, Cout)
    wmat = jnp.pad(wmat, ((0, 0), (0, Np - Cout))).astype(jnp.bfloat16)
    bm = jnp.pad(bias, (0, Np - Cout)).reshape(1, Np).astype(jnp.float32)
    out = _matmul_bias(a, wmat, bm, lrelu=lrelu)
    return out[:, :Cout].reshape(B, Ho, Wo, Cout)


def conv2d(x, weight, bias, *, stride=1, padding=1, dilation=1, lrelu=False,
           pads=None):
    if pads is None:
        pads = (padding, padding, padding, padding)
    if stride == 1:
        B, H, W, Cin = x.shape
        Cout, _, kh, kw = weight.shape
        Wrow = W + pads[2] + pads[3]
        M = (H + pads[0] + pads[1] - dilation * (kh - 1)) * Wrow
        max_shift = dilation * ((kh - 1) * Wrow + (kw - 1))
        L = _round_up(max(M, 1), _TM) + _round_up(max_shift, _SUB) + _SUB
        Np = _round_up(Cout, _LANE)
        resident = 2 * L * Cin * 4 + 2 * kh * kw * Cin * Np * 2 + 4 * _TM * Np * 4
        if resident < _vmem_limit_bytes() // 2:
            return _conv2d_s1_pallas(x, weight, bias, dilation=dilation,
                                     pads=pads, lrelu=lrelu)
    return _conv2d_im2col(x, weight, bias, stride=stride, pads=pads,
                          dilation=dilation, lrelu=lrelu)


_PHASE_TAPS = ((3, 1), (2, 0))   # transposed-conv tap indices per output phase


def conv_transpose2d(x, weight, bias, *, stride=2, padding=1):
    """ConvTranspose2d(k=4, s=2, p=1) via sub-pixel decomposition: 4 stride-1
    2x2 phase convolutions, outputs interleaved (no zero-insertion)."""
    B, H, W, Cin = x.shape
    _, Cout, kh, kw = weight.shape
    assert stride == 2 and padding == 1 and kh == 4 and kw == 4
    phases = []
    for ry in range(2):
        for rx in range(2):
            ki = np.array(_PHASE_TAPS[ry])
            kj = np.array(_PHASE_TAPS[rx])
            w_ph = weight[:, :, ki[:, None], kj[None, :]]        # (Cin, Cout, 2, 2)
            w_ph = jnp.transpose(w_ph, (1, 0, 2, 3))             # (Cout, Cin, 2, 2)
            pt, pb = (1, 0) if ry == 0 else (0, 1)
            pleft, pright = (1, 0) if rx == 0 else (0, 1)
            phases.append(conv2d(x, w_ph, bias, stride=1, dilation=1,
                                 lrelu=False, pads=(pt, pb, pleft, pright)))
    y = jnp.stack(phases, axis=0).reshape(2, 2, B, H, W, Cout)
    y = jnp.transpose(y, (2, 3, 0, 4, 1, 5)).reshape(B, 2 * H, 2 * W, Cout)
    return y


# ---------------------------------------------------------------------------
# Correlation (cost volume), fused LeakyReLU
# ---------------------------------------------------------------------------
def correlation_lrelu(x1, x2, md=4, tm=_TM):
    """FlowNet-style correlation (max displacement 4, 81 channels).

    Channel c <-> (dy, dx) = (c // 9 - 4, c % 9 - 4); per-pixel dot product is
    normalized by the number of input channels, then LeakyReLU(0.1).
    """
    B, H, W, C = x1.shape
    D = (2 * md + 1) ** 2
    Wrow = W + 2 * md
    M = H * Wrow
    Mp = _round_up(M, tm)
    shifts = tuple(ky * Wrow + kx
                   for ky in range(2 * md + 1) for kx in range(2 * md + 1))
    L2 = Mp + _round_up(max(shifts), _SUB) + _SUB

    x1f = jnp.pad(x1, ((0, 0), (0, 0), (0, 2 * md), (0, 0))).reshape(B, M, C)
    x1f = jnp.pad(x1f, ((0, 0), (0, Mp - M), (0, 0)))
    x2p = jnp.pad(x2, ((0, 0), (md, md), (md, md), (0, 0)))
    x2p = x2p.reshape(B, (H + 2 * md) * Wrow, C)
    x2p = jnp.pad(x2p, ((0, 0), (0, L2 - x2p.shape[1]), (0, 0)))

    Np = _round_up(D, _LANE)   # 128-wide lane-dense output, 81 real channels
    out = pl.pallas_call(
        functools.partial(_corr_kernel, shifts=shifts, tm=tm, inv_c=1.0 / C),
        out_shape=jax.ShapeDtypeStruct((B, Mp, Np), jnp.float32),
        grid=(B, Mp // tm),
        in_specs=[
            pl.BlockSpec((None, tm, C), lambda b, i: (b, i, 0)),
            pl.BlockSpec((None, L2, C), lambda b, i: (b, 0, 0)),
        ],
        out_specs=pl.BlockSpec((None, tm, Np), lambda b, i: (b, i, 0)),
        compiler_params=pltpu.CompilerParams(
            dimension_semantics=("parallel", "parallel"),
            vmem_limit_bytes=_vmem_limit_bytes(),
        ),
    )(x1f, x2p)
    out = out[:, :M, :].reshape(B, H, Wrow, Np)
    return out[:, :, :W, :D]


# ---------------------------------------------------------------------------
# Backward warping (grid_sample bilinear, zeros padding, align_corners=False)
# ---------------------------------------------------------------------------
# TODO(synk): grid_sample's data-dependent per-pixel gather is left in plain JAX
# (no clean Pallas equivalent for dynamic gather at these sizes).
def _grid_sample_bilinear_zeros(img, grid):
    B, H, W, C = img.shape
    gx = grid[..., 0]
    gy = grid[..., 1]
    x = ((gx + 1.0) * W - 1.0) / 2.0
    y = ((gy + 1.0) * H - 1.0) / 2.0
    x0 = jnp.floor(x)
    y0 = jnp.floor(y)
    x1 = x0 + 1.0
    y1 = y0 + 1.0
    wx1 = x - x0
    wx0 = 1.0 - wx1
    wy1 = y - y0
    wy0 = 1.0 - wy1
    flat = img.reshape(B, H * W, C)

    def gather(ix, iy):
        valid = (ix >= 0) & (ix <= W - 1) & (iy >= 0) & (iy <= H - 1)
        ixc = jnp.clip(ix, 0, W - 1).astype(jnp.int32)
        iyc = jnp.clip(iy, 0, H - 1).astype(jnp.int32)
        idx = (iyc * W + ixc).reshape(B, H * W)
        vals = jax.vmap(lambda f, i: jnp.take(f, i, axis=0))(flat, idx)
        vals = vals.reshape(B, H, W, C)
        return vals * valid[..., None].astype(img.dtype)

    v00 = gather(x0, y0)
    v01 = gather(x1, y0)
    v10 = gather(x0, y1)
    v11 = gather(x1, y1)
    return (v00 * (wx0 * wy0)[..., None] + v01 * (wx1 * wy0)[..., None]
            + v10 * (wx0 * wy1)[..., None] + v11 * (wx1 * wy1)[..., None])


def backward_warp(inp, flow):
    """Backward() from the PyTorch reference, NHWC. flow[...,0]=x, flow[...,1]=y."""
    B, H, W, C = inp.shape
    gridx = jnp.broadcast_to(jnp.linspace(-1.0, 1.0, W).reshape(1, 1, W), (B, H, W))
    gridy = jnp.broadcast_to(jnp.linspace(-1.0, 1.0, H).reshape(1, H, 1), (B, H, W))
    fx = flow[..., 0] / ((W - 1.0) / 2.0)
    fy = flow[..., 1] / ((H - 1.0) / 2.0)
    grid = jnp.stack([gridx + fx, gridy + fy], axis=-1)
    inp_aug = jnp.concatenate([inp, jnp.ones((B, H, W, 1), inp.dtype)], axis=-1)
    out = _grid_sample_bilinear_zeros(inp_aug, grid)
    mask = out[..., -1:]
    mask = jnp.where(mask > 0.999, 1.0, 0.0)
    return out[..., :-1] * mask


# ---------------------------------------------------------------------------
# Parameter init (deterministic, synthetic)
# ---------------------------------------------------------------------------
class _KeyGen:
    def __init__(self, key):
        self._key = key
        self._i = 0

    def __call__(self):
        self._i += 1
        return jax.random.fold_in(self._key, self._i)


def _uniform(key, shape, scale):
    return jax.random.uniform(key, shape, jnp.float32, -scale, scale)


def init_conv(key, cin, cout, k=3):
    kw_, kb_ = jax.random.split(key)
    scale = 1.0 / math.sqrt(cin * k * k)
    return {'w': _uniform(kw_, (cout, cin, k, k), scale),
            'b': _uniform(kb_, (cout,), scale)}


def init_deconv(key, cin, cout, k=4):
    kw_, kb_ = jax.random.split(key)
    scale = 1.0 / math.sqrt(cin * k * k)
    return {'w': _uniform(kw_, (cin, cout, k, k), scale),
            'b': _uniform(kb_, (cout,), scale)}


def init_network_params(key):
    kg = _KeyGen(key)
    params = {}

    # Extractor: 6 stages x 3 convs (first conv of each stage has stride 2).
    ext_channels = [(3, 16), (16, 32), (32, 64), (64, 96), (96, 128), (128, 196)]
    extractor = []
    for cin, cout in ext_channels:
        extractor.append([init_conv(kg(), cin, cout),
                          init_conv(kg(), cout, cout),
                          init_conv(kg(), cout, cout)])
    params['extractor'] = extractor

    int_current = {2: 81 + 32 + 2 + 2, 3: 81 + 64 + 2 + 2,
                   4: 81 + 96 + 2 + 2, 5: 81 + 128 + 2 + 2, 6: 81}
    decoders = {}
    for lvl in (2, 3, 4, 5, 6):
        cur = int_current[lvl]
        d = {}
        if lvl < 6:
            prev = int_current[lvl + 1]
            d['upflow'] = init_deconv(kg(), 2, 2)
            d['upfeat'] = init_deconv(kg(), prev + 128 + 128 + 96 + 64 + 32, 2)
        d['one'] = init_conv(kg(), cur, 128)
        d['two'] = init_conv(kg(), cur + 128, 128)
        d['thr'] = init_conv(kg(), cur + 256, 96)
        d['fou'] = init_conv(kg(), cur + 352, 64)
        d['fiv'] = init_conv(kg(), cur + 416, 32)
        d['six'] = init_conv(kg(), cur + 448, 2)
        decoders[lvl] = d
    params['decoders'] = decoders

    refiner_spec = [(565, 128), (128, 128), (128, 128), (128, 96),
                    (96, 64), (64, 32), (32, 2)]
    params['refiner'] = [init_conv(kg(), cin, cout) for cin, cout in refiner_spec]
    return params


# ---------------------------------------------------------------------------
# Network forward
# ---------------------------------------------------------------------------
def extractor_forward(stages, x):
    feats = []
    for stage in stages:
        for i, cp in enumerate(stage):
            x = conv2d(x, cp['w'], cp['b'], stride=2 if i == 0 else 1,
                       padding=1, lrelu=True)
        feats.append(x)
    return feats


def decoder_forward(p, first, second, prev, dbl_backward):
    if prev is None:
        feat = correlation_lrelu(first, second)
    else:
        flow_up = conv_transpose2d(prev['flow'], p['upflow']['w'], p['upflow']['b'])
        feat_up = conv_transpose2d(prev['feat'], p['upfeat']['w'], p['upfeat']['b'])
        warped = backward_warp(second, flow_up * dbl_backward)
        volume = correlation_lrelu(first, warped)
        feat = jnp.concatenate([volume, first, flow_up, feat_up], axis=-1)
    # TODO(synk): the five growing concat convs could be further fused into one
    # pallas_call keeping feat resident in VMEM; each conv already reads feat ~1x.
    for name in ('one', 'two', 'thr', 'fou', 'fiv'):
        feat = jnp.concatenate(
            [conv2d(feat, p[name]['w'], p[name]['b'], lrelu=True), feat], axis=-1)
    flow = conv2d(feat, p['six']['w'], p['six']['b'], lrelu=False)
    return {'flow': flow, 'feat': feat}


def refiner_forward(p, x):
    dilations = [1, 2, 4, 8, 16, 1, 1]
    for i, cp in enumerate(p):
        last = i == len(p) - 1
        x = conv2d(x, cp['w'], cp['b'], stride=1, padding=dilations[i],
                   dilation=dilations[i], lrelu=not last)
    return x


def network_forward(params, tensor_first_nchw, tensor_second_nchw):
    first = jnp.transpose(tensor_first_nchw, (0, 2, 3, 1)).astype(jnp.float32)
    second = jnp.transpose(tensor_second_nchw, (0, 2, 3, 1)).astype(jnp.float32)
    f_first = extractor_forward(params['extractor'], first)
    f_second = extractor_forward(params['extractor'], second)
    dbl = {6: None, 5: 0.625, 4: 1.25, 3: 2.5, 2: 5.0}
    est = None
    for lvl in (6, 5, 4, 3, 2):
        est = decoder_forward(params['decoders'][lvl], f_first[lvl - 1],
                              f_second[lvl - 1], est, dbl[lvl])
    flow = est['flow'] + refiner_forward(params['refiner'], est['feat'])
    return jnp.transpose(flow, (0, 3, 1, 2))  # back to NCHW (B, 2, H/4, W/4)


# ---------------------------------------------------------------------------
if __name__ == "__main__":
    key = jax.random.PRNGKey(0)
    pkey, k1, k2 = jax.random.split(key, 3)
    params = init_network_params(pkey)

    B, H, W = 2, 64, 64  # smallest clean size: 6 stride-2 levels -> 1x1 at level 6
    tensor_first = jax.random.normal(k1, (B, 3, H, W), jnp.float32)
    tensor_second = jax.random.normal(k2, (B, 3, H, W), jnp.float32)

    out = network_forward(params, tensor_first, tensor_second)
    out = jax.block_until_ready(out)

    assert out.shape == (B, 2, H // 4, W // 4), out.shape
    assert bool(jnp.all(jnp.isfinite(out)))
    print("KERNEL_OK")
</pallas_src>

<mosaic_0001>
module attributes {stable_mosaic.version = 11 : i64} {
  func.func @_matmul_bias_kernel(%arg0: i32, %arg1: memref<256x27xf32, #tpu.memory_space<vmem>>, %arg2: memref<27x128xbf16, #tpu.memory_space<vmem>>, %arg3: memref<1x128xf32, #tpu.memory_space<vmem>>, %arg4: memref<256x128xf32, #tpu.memory_space<vmem>>) attributes {dimension_semantics = [#tpu.dimension_semantics<parallel>], iteration_bounds = array<i64: 8>, scalar_prefetch = 0 : i64, scratch_operands = 0 : i64, tpu.core_type = #tpu.core_type<tc>, window_params = [{transform_indices = @transform_0, window_bounds = array<i64: 256, 27>}, {pipeline_mode = #tpu.pipeline_mode<synchronous>, transform_indices = @transform_1, window_bounds = array<i64: 27, 128>}, {pipeline_mode = #tpu.pipeline_mode<synchronous>, transform_indices = @transform_2, window_bounds = array<i64: 1, 128>}, {transform_indices = @transform_3, window_bounds = array<i64: 256, 128>}]} {
    %c0 = arith.constant 0 : index
    %c0_0 = arith.constant 0 : index
    %0 = vector.load %arg1[%c0, %c0_0] : memref<256x27xf32, #tpu.memory_space<vmem>>, vector<256x27xf32>
    %1 = arith.truncf %0 : vector<256x27xf32> to vector<256x27xbf16>
    %c0_1 = arith.constant 0 : index
    %c0_2 = arith.constant 0 : index
    %2 = vector.load %arg2[%c0_1, %c0_2] : memref<27x128xbf16, #tpu.memory_space<vmem>>, vector<27x128xbf16>
    %cst = arith.constant dense<0.000000e+00> : vector<256x128xf32>
    %3 = tpu.matmul %1, %2, %cst {dimension_numbers = #tpu.dot_dimension_numbers<[1], [0], [0], [1], [0, 0, 1, 1], [], []>} : vector<256x27xbf16>, vector<27x128xbf16>, vector<256x128xf32> -> vector<256x128xf32>
    %c0_3 = arith.constant 0 : index
    %c0_4 = arith.constant 0 : index
    %4 = vector.load %arg3[%c0_3, %c0_4] : memref<1x128xf32, #tpu.memory_space<vmem>>, vector<1x128xf32>
    %5 = vector.broadcast %4 : vector<1x128xf32> to vector<256x128xf32>
    %6 = arith.addf %3, %5 : vector<256x128xf32>
    %cst_5 = arith.constant 0.000000e+00 : f32
    %7 = vector.broadcast %cst_5 : f32 to vector<256x128xf32>
    %8 = arith.cmpf oge, %6, %7 : vector<256x128xf32>
    %cst_6 = arith.constant 1.000000e-01 : f32
    %9 = vector.broadcast %cst_6 : f32 to vector<256x128xf32>
    %10 = arith.mulf %6, %9 : vector<256x128xf32>
    %11 = arith.select %8, %6, %10 : vector<256x128xi1>, vector<256x128xf32>
    %c0_7 = arith.constant 0 : index
    %c0_8 = arith.constant 0 : index
    %12 = vector.load %arg4[%c0_7, %c0_8] : memref<256x128xf32, #tpu.memory_space<vmem>>, vector<256x128xf32>
    tpu.vector_store %arg4[%c0_7, %c0_8], %11 {strides = array<i32>} : memref<256x128xf32, #tpu.memory_space<vmem>>, vector<256x128xf32>,
    return
  }
  func.func @transform_0(%arg0: i32) -> (i32, i32) {
    %c0_i32 = arith.constant 0 : i32
    %c0_i32_0 = arith.constant 0 : i32
    return %arg0, %c0_i32 : i32, i32
  }
  func.func @transform_1(%arg0: i32) -> (i32, i32) {
    %c0_i32 = arith.constant 0 : i32
    %c0_i32_0 = arith.constant 0 : i32
    %c0_i32_1 = arith.constant 0 : i32
    return %c0_i32, %c0_i32_0 : i32, i32
  }
  func.func @transform_2(%arg0: i32) -> (i32, i32) {
    %c0_i32 = arith.constant 0 : i32
    %c0_i32_0 = arith.constant 0 : i32
    %c0_i32_1 = arith.constant 0 : i32
    return %c0_i32, %c0_i32_0 : i32, i32
  }
  func.func @transform_3(%arg0: i32) -> (i32, i32) {
    %c0_i32 = arith.constant 0 : i32
    %c0_i32_0 = arith.constant 0 : i32
    return %arg0, %c0_i32 : i32, i32
  }
}

</mosaic_0001>

<llo_original>
// kernel: tpu_custom_call.1
$region0: #{tpu_custom_call.1}
  #allocation0 [shape = 'u32[]', space=smem, size = 0x4, offset = 0x4, fixed_abs, tag = 'smem constant byte address 0x4 - core index']
  #allocation1 [shape = 'u32[144,128]{1,0:T(1,128)}', space=vmem, size = 0x12000, scoped, tag = 'internal scratch']
  %s0 = inlined_call_operand.vmem [shape: f32[2048,27], index: 0, kind: input, shape index: {}]
  %s1 = inlined_call_operand.vmem [shape: bf16[27,128], index: 1, kind: input, shape index: {}]
  %s2 = inlined_call_operand.vmem [shape: f32[1,128], index: 2, kind: input, shape index: {}]
  %s3 = inlined_call_operand.hbm [shape: f32[2048,128], index: 3, kind: output, shape index: {}]
  %s4 = sld [smem:[#allocation0]]
  $region45: #{tpu_custom_call.1} parent=0
    _
  %s6 = ssub.s32 1, %s4
  %s7 = scalar_select 0, %s6, %s4
  $region1: #{tpu_custom_call.1} parent=0
    #allocation2 [shape = 'u8[262144]{0}', space=vmem, size = 0x40000, scoped, tag = 'output window, operand 0']
    #allocation3 [shape = 's32[2]{0}', space=sflag, size = 0x8, scoped, tag = 'scoped memory for tpu_custom_call.1']
    %8 = vsyncpa [#allocation3], 0
    %s9 = scalar_lea.sflag [#allocation3], 1
    %10 = vsyncpa %s9, 0
    loop: start=0, step=1, limit=10
    $region2: #{tpu_custom_call.1} parent=1 // loop_pre_header
      _
    $region3: #{tpu_custom_call.1} parent=1 // loop_header
      %s12 = sphi 0, %s16
      %p13 = scmp.ge.s32.totalorder %s12, 10
      %s22 = sphi 0, %s24
      %s25 = sphi 0, %s22
      %s26 = sphi 0, %s25
      %s42 = sphi 0, %s26
      %s46 = sphi 0, %s46
      %s48 = sphi 0, %s46
      %s49 = sphi 0, %s48
      %s63 = sphi 0, %s49
      %s67 = sphi 0, %s67
      %s69 = sphi 0, %s67
      %s70 = sphi 0, %s69
      %s84 = sphi 0, %s70
      %s90 = sphi 0, %s92
      %s93 = sphi 0, %s90
      %s94 = sphi 0, %s93
      %s110 = sphi 0, %s94
    $region4: #{tpu_custom_call.1} parent=1 // loop_header_branch
      %15 = sbr.rel (%p13) target = $region8
    $region5: #{tpu_custom_call.1} parent=1 // loop_body
      %s17 = ssub.s32 %s12, 1
      %s18 = ssub.s32 %s12, 2
      %s19 = sadd.s32 %s12, 1
      %s20 = ssub.s32 %s12, %s19
      %p21 = scmp.eq.s32.totalorder %s20, 0
      %s23 = sadd.s32 %s22, 1
      %s24 = scalar_select %p21, %s22, %s23
      %p27 = pneg %p21
      %p28 = scmp.eq.s32.totalorder %s12, 7
      %p29 = por %p27, %p28
      %p30 = scmp.ne.s32.totalorder %s22, %s25
      %p31 = scmp.eq.s32.totalorder %s12, 0
      %p32 = por %p30, %p31
      %p33 = scmp.ne.s32.totalorder %s22, %s25
      %p34 = scmp.eq.s32.totalorder %s17, 7
      %p35 = por %p33, %p34
      %p36 = scmp.ne.s32.totalorder %s25, %s26
      %p37 = scmp.eq.s32.totalorder %s17, 0
      %p38 = por %p36, %p37
      %p39 = scmp.ne.s32.totalorder %s25, %s26
      %p40 = scmp.eq.s32.totalorder %s18, 7
      %p41 = por %p39, %p40
      %p43 = scmp.ne.s32.totalorder %s26, %s42
      %p44 = scmp.eq.s32.totalorder %s18, 0
      %p45 = por %p43, %p44
      %s47 = sadd.s32 %s46, 1
      %p50 = scmp.eq.s32.totalorder %s12, 7
      %p51 = scmp.ne.s32.totalorder %s46, %s48
      %p52 = scmp.eq.s32.totalorder %s12, 0
      %p53 = por %p51, %p52
      %p54 = scmp.ne.s32.totalorder %s46, %s48
      %p55 = scmp.eq.s32.totalorder %s17, 7
      %p56 = por %p54, %p55
      %p57 = scmp.ne.s32.totalorder %s48, %s49
      %p58 = scmp.eq.s32.totalorder %s17, 0
      %p59 = por %p57, %p58
      %p60 = scmp.ne.s32.totalorder %s48, %s49
      %p61 = scmp.eq.s32.totalorder %s18, 7
      %p62 = por %p60, %p61
      %p64 = scmp.ne.s32.totalorder %s49, %s63
      %p65 = scmp.eq.s32.totalorder %s18, 0
      %p66 = por %p64, %p65
      %s68 = sadd.s32 %s67, 1
      %p71 = scmp.eq.s32.totalorder %s12, 7
      %p72 = scmp.ne.s32.totalorder %s67, %s69
      %p73 = scmp.eq.s32.totalorder %s12, 0
      %p74 = por %p72, %p73
      %p75 = scmp.ne.s32.totalorder %s67, %s69
      %p76 = scmp.eq.s32.totalorder %s17, 7
      %p77 = por %p75, %p76
      %p78 = scmp.ne.s32.totalorder %s69, %s70
      %p79 = scmp.eq.s32.totalorder %s17, 0
      %p80 = por %p78, %p79
      %p81 = scmp.ne.s32.totalorder %s69, %s70
      %p82 = scmp.eq.s32.totalorder %s18, 7
      %p83 = por %p81, %p82
      %p85 = scmp.ne.s32.totalorder %s70, %s84
      %p86 = scmp.eq.s32.totalorder %s18, 0
      %p87 = por %p85, %p86
      %s88 = ssub.s32 %s12, %s19
      %p89 = scmp.eq.s32.totalorder %s88, 0
      %s91 = sadd.s32 %s90, 1
      %s92 = scalar_select %p89, %s90, %s91
      %p95 = pneg %p89
      %p96 = scmp.eq.s32.totalorder %s12, 7
      %p97 = por %p95, %p96
      %p98 = scmp.ne.s32.totalorder %s90, %s93
      %p99 = scmp.eq.s32.totalorder %s12, 0
      %p100 = por %p98, %p99
      %p101 = scmp.ne.s32.totalorder %s90, %s93
      %p102 = scmp.eq.s32.totalorder %s17, 7
      %p103 = por %p101, %p102
      %p104 = scmp.ne.s32.totalorder %s93, %s94
      %p105 = scmp.eq.s32.totalorder %s17, 0
      %p106 = por %p104, %p105
      %p107 = scmp.ne.s32.totalorder %s93, %s94
      %p108 = scmp.eq.s32.totalorder %s18, 7
      %p109 = por %p107, %p108
      %p111 = scmp.ne.s32.totalorder %s94, %s110
      %p112 = scmp.eq.s32.totalorder %s18, 0
      %p113 = por %p111, %p112
      %p114 = scmp.le.s32.totalorder 1, %s12
      %p115 = scmp.lt.s32.totalorder %s12, 9
      %p116 = pnand %p114, %p115
      %p117 = pneg %p116
      // Predicated region
      $region9: #{tpu_custom_call.1} parent=5 // pred_check
        _
      $region10: #{tpu_custom_call.1} parent=5 // pred_check_branch
        %119 = sbr.rel (%p116) target = $region12
      $region11: #{tpu_custom_call.1} parent=5 // pred_region
        %s120 = ssub.s32 %s12, 1
        // Predicated region
        $region13: #{tpu_custom_call.1} parent=11 // pred_check
          %p121 = pneg %p59
        $region14: #{tpu_custom_call.1} parent=11 // pred_check_branch
          %123 = sbr.rel (%p121) target = $region16
        $region15: #{tpu_custom_call.1} parent=11 // pred_region
          _
        $region16: #{tpu_custom_call.1} parent=11 // pred_fallthru
          _
        // Predicated region
        $region17: #{tpu_custom_call.1} parent=11 // pred_check
          %p124 = pneg %p80
        $region18: #{tpu_custom_call.1} parent=11 // pred_check_branch
          %126 = sbr.rel (%p124) target = $region20
        $region19: #{tpu_custom_call.1} parent=11 // pred_region
          _
        $region20: #{tpu_custom_call.1} parent=11 // pred_fallthru
          _
      $region12: #{tpu_custom_call.1} parent=5 // pred_fallthru
        _
      %p127 = scmp.lt.s32.totalorder %s12, 8
      // Predicated region
      $region21: #{tpu_custom_call.1} parent=5 // pred_check
        %p128 = pneg %p127
      $region22: #{tpu_custom_call.1} parent=5 // pred_check_branch
        %130 = sbr.rel (%p128) target = $region24
      $region23: #{tpu_custom_call.1} parent=5 // pred_region
        // Predicated region
        $region25: #{tpu_custom_call.1} parent=23 // pred_check
          %p131 = pneg %p32
        $region26: #{tpu_custom_call.1} parent=23 // pred_check_branch
          %133 = sbr.rel (%p131) target = $region28
        $region27: #{tpu_custom_call.1} parent=23 // pred_region
          %s134 = smul.u32 32, %s12
          %p135 = scmp.lt.s32.totalorder %s134, 255
          %s136 = scalar_select %p135, %s134, 255
          %s137 = smul.addr %s136, 8
          %s138 = scalar_lea.vmem %s0, %s137
          %s139 = smul.u32 32, %s12
        $region28: #{tpu_custom_call.1} parent=23 // pred_fallthru
          _
      $region24: #{tpu_custom_call.1} parent=5 // pred_fallthru
        _
      %p140 = scmp.le.s32.totalorder 1, %s12
      %p141 = scmp.lt.s32.totalorder %s12, 9
      %p142 = pnand %p140, %p141
      %p143 = pneg %p142
      // Predicated region
      $region29: #{tpu_custom_call.1} parent=5 // pred_check
        _
      $region30: #{tpu_custom_call.1} parent=5 // pred_check_branch
        %145 = sbr.rel (%p142) target = $region32
      $region31: #{tpu_custom_call.1} parent=5 // pred_region
        %s146 = ssub.s32 %s12, 1
        %s147 = smul.u32 32, %s17
        %p148 = scmp.lt.s32.totalorder %s147, 255
        %s149 = scalar_select %p148, %s147, 255
        %s150 = smul.addr %s149, 8
        %s151 = scalar_lea.vmem %s0, %s150
        %p152 = pneg %p38
        %p153 = pneg %p35
        %p154 = pneg %p59
        %p155 = pneg %p56
        %p156 = pneg %p80
        %p157 = pneg %p77
        %p158 = pneg %p106
        %p159 = pneg %p103
        %s160 = sand.u32 %s93, 1
        %s161 = scalar_lea.sflag [#allocation3], %s160
        %s162 = sand.u32 %s93, 1
        %s163 = smul.addr %s162, 256
        %s164 = scalar_lea.vmem [#allocation2], %s163
        %s165 = smul.u32 32, %s17
        %p166 = scmp.lt.s32.totalorder %s165, 255
        %s167 = scalar_select %p166, %s165, 255
        %s168 = smul.addr %s167, 8
        %s169 = scalar_lea.vmem %s0, %s168
        %s170 = smul.u32 32, %s17
        %s171 = smul.u32 32, %s17
        %v173 = vld [vmem:[%s169] sm:$0xff]
        %v174 = vld [vmem:[%s169 + $0x8] sm:$0xff]
        %v175 = vld [vmem:[%s169 + $0x10] sm:$0xff]
        %v176 = vld [vmem:[%s169 + $0x18] sm:$0xff]
        %v177 = vld [vmem:[%s169 + $0x20] sm:$0xff]
        %v178 = vld [vmem:[%s169 + $0x28] sm:$0xff]
        %v179 = vld [vmem:[%s169 + $0x30] sm:$0xff]
        %v180 = vld [vmem:[%s169 + $0x38] sm:$0xff]
        %v181 = vld [vmem:[%s169 + $0x40] sm:$0xff]
        %v182 = vld [vmem:[%s169 + $0x48] sm:$0xff]
        %v183 = vld [vmem:[%s169 + $0x50] sm:$0xff]
        %v184 = vld [vmem:[%s169 + $0x58] sm:$0xff]
        %v185 = vld [vmem:[%s169 + $0x60] sm:$0xff]
        %v186 = vld [vmem:[%s169 + $0x68] sm:$0xff]
        %v187 = vld [vmem:[%s169 + $0x70] sm:$0xff]
        %v188 = vld [vmem:[%s169 + $0x78] sm:$0xff]
        %v189 = vld [vmem:[%s169 + $0x80] sm:$0xff]
        %v190 = vld [vmem:[%s169 + $0x88] sm:$0xff]
        %v191 = vld [vmem:[%s169 + $0x90] sm:$0xff]
        %v192 = vld [vmem:[%s169 + $0x98] sm:$0xff]
        %v193 = vld [vmem:[%s169 + $0xa0] sm:$0xff]
        %v194 = vld [vmem:[%s169 + $0xa8] sm:$0xff]
        %v195 = vld [vmem:[%s169 + $0xb0] sm:$0xff]
        %v196 = vld [vmem:[%s169 + $0xb8] sm:$0xff]
        %v197 = vld [vmem:[%s169 + $0xc0] sm:$0xff]
        %v198 = vld [vmem:[%s169 + $0xc8] sm:$0xff]
        %v199 = vld [vmem:[%s169 + $0xd0] sm:$0xff]
        %v200 = vld [vmem:[%s169 + $0xd8] sm:$0xff]
        %v201 = vld [vmem:[%s169 + $0xe0] sm:$0xff]
        %v202 = vld [vmem:[%s169 + $0xe8] sm:$0xff]
        %v203 = vld [vmem:[%s169 + $0xf0] sm:$0xff]
        %v204 = vld [vmem:[%s169 + $0xf8] sm:$0xff]
        %v205 = vpack.c.bf16 %v174, %v173
        %v206 = vpack.c.bf16 %v176, %v175
        %v207 = vpack.c.bf16 %v178, %v177
        %v208 = vpack.c.bf16 %v180, %v179
        %v209 = vpack.c.bf16 %v182, %v181
        %v210 = vpack.c.bf16 %v184, %v183
        %v211 = vpack.c.bf16 %v186, %v185
        %v212 = vpack.c.bf16 %v188, %v187
        %v213 = vpack.c.bf16 %v190, %v189
        %v214 = vpack.c.bf16 %v192, %v191
        %v215 = vpack.c.bf16 %v194, %v193
        %v216 = vpack.c.bf16 %v196, %v195
        %v217 = vpack.c.bf16 %v198, %v197
        %v218 = vpack.c.bf16 %v200, %v199
        %v219 = vpack.c.bf16 %v202, %v201
        %v220 = vpack.c.bf16 %v204, %v203
        %v221 = vld [vmem:[%s1] sm:$0xf]
        %v222 = vld [vmem:[%s1 + $0x4] sm:$0xf]
        %v223 = vld [vmem:[%s1 + $0x8] sm:$0xf]
        %v224 = vld [vmem:[%s1 + $0xc] sm:$0x3]
        %v225 = vld [vmem:[%s2] sm:$0x1]
        %v227 = vlaneseq
        %v228 = vshrl.u32 %v227, 7
        %v229 = vsub.s32 0, %v228
        %v230 = vrot.slane %v225, %v229
        %v236 = vunpack.c.l.b16 %v221
        %v237 = vunpack.c.l.b16 %v222
        %v238 = vunpack.c.l.b16 %v223
        %v239 = vunpack.c.l.b16 %v224
        %v240 = vpack.c.b16 %v237, %v236
        %v241 = vpack.c.b16 %v239, %v238
        %vm243 = vcmask 220160
        %v245 = vsel %vm243, %v205, 0
        %v248 = vsel %vm243, %v206, 0
        %v251 = vsel %vm243, %v207, 0
        %v254 = vsel %vm243, %v208, 0
        %v257 = vsel %vm243, %v209, 0
        %v260 = vsel %vm243, %v210, 0
        %v263 = vsel %vm243, %v211, 0
        %v266 = vsel %vm243, %v212, 0
        %v269 = vsel %vm243, %v213, 0
        %v272 = vsel %vm243, %v214, 0
        %v275 = vsel %vm243, %v215, 0
        %v278 = vsel %vm243, %v216, 0
        %v281 = vsel %vm243, %v217, 0
        %v284 = vsel %vm243, %v218, 0
        %v287 = vsel %vm243, %v219, 0
        %v290 = vsel %vm243, %v220, 0
        %vm292 = vcmask 1044480
        %vm293 = vcmask 1045504
        %v294 = vsel %vm292, 4294967295, 65535
        %v295 = vsel %vm293, %v294, 0
        %v297 = vand.u32 %v241, %v295
        %299 = vmatprep.subr.bf16.mxu0 0
        %300 = vmatpush1.bf16.msra.mxu0 %v240
        %301 = vmatprep.subr.bf16.mxu0 0
        %302 = vmatpush1.bf16.msra.mxu0 %v297
        %303 = vmatprep.subr.bf16.mxu0 0
        %304 = vmatpush1.bf16.msra.mxu0 0
        %305 = vmatprep.subr.bf16.mxu0 0
        %306 = vmatpush1.bf16.msra.mxu0 0
        %307 = vmatprep.subr.bf16.mxu0 0
        %308 = vmatpush1.bf16.msra.mxu0 0
        %309 = vmatprep.subr.bf16.mxu0 0
        %310 = vmatpush1.bf16.msra.mxu0 0
        %311 = vmatprep.subr.bf16.mxu0 0
        %312 = vmatpush1.bf16.msra.mxu0 0
        %313 = vmatprep.subr.bf16.mxu0 0
        %314 = vmatpush1.bf16.msra.mxu0 0
        %315 = vmatprep.subr.bf16.mxu0 0
        %316 = vmatpush1.bf16.msra.mxu0 0
        %317 = vmatprep.subr.bf16.mxu0 0
        %318 = vmatpush1.bf16.msra.mxu0 0
        %319 = vmatprep.subr.bf16.mxu0 0
        %320 = vmatpush1.bf16.msra.mxu0 0
        %321 = vmatprep.subr.bf16.mxu0 0
        %322 = vmatpush1.bf16.msra.mxu0 0
        %323 = vmatprep.subr.bf16.mxu0 0
        %324 = vmatpush1.bf16.msra.mxu0 0
        %325 = vmatprep.subr.bf16.mxu0 0
        %326 = vmatpush1.bf16.msra.mxu0 0
        %327 = vmatprep.subr.bf16.mxu0 0
        %328 = vmatpush1.bf16.msra.mxu0 0
        %329 = vmatprep.subr.bf16.mxu0 0
        %330 = vmatpush1.bf16.msra.mxu0 0
        %331 = vmatprep.mubr.bf16.mxu0 0
        %332 = vmatmul.mubr.bf16.gmra.mrb[0].mxu0 %v245
        %v333 = vpop.f32.mrb[0].mxu0
        %v334 = vadd.f32 %v230, %v333
        %v335 = vpop.f32.mrb[0].mxu0
        %v336 = vpop.f32.mrb[0].mxu0
        %v337 = vadd.f32 %v230, %v336
        %v338 = vpop.f32.mrb[0].mxu0
        %339 = vmatprep.mubr.bf16.mxu0 0
        %340 = vmatmul.mubr.bf16.gmra.mrb[0].mxu0 %v248
        %v341 = vpop.f32.mrb[0].mxu0
        %v342 = vadd.f32 %v230, %v341
        %v343 = vpop.f32.mrb[0].mxu0
        %v344 = vpop.f32.mrb[0].mxu0
        %v345 = vadd.f32 %v230, %v344
        %v346 = vpop.f32.mrb[0].mxu0
        %347 = vmatprep.mubr.bf16.mxu0 0
        %348 = vmatmul.mubr.bf16.gmra.mrb[0].mxu0 %v251
        %v349 = vpop.f32.mrb[0].mxu0
        %v350 = vadd.f32 %v230, %v349
        %v351 = vpop.f32.mrb[0].mxu0
        %v352 = vpop.f32.mrb[0].mxu0
        %v353 = vadd.f32 %v230, %v352
        %v354 = vpop.f32.mrb[0].mxu0
        %355 = vmatprep.mubr.bf16.mxu0 0
        %356 = vmatmul.mubr.bf16.gmra.mrb[0].mxu0 %v254
        %v357 = vpop.f32.mrb[0].mxu0
        %v358 = vadd.f32 %v230, %v357
        %v359 = vpop.f32.mrb[0].mxu0
        %v360 = vpop.f32.mrb[0].mxu0
        %v361 = vadd.f32 %v230, %v360
        %v362 = vpop.f32.mrb[0].mxu0
        %363 = vmatprep.mubr.bf16.mxu0 0
        %364 = vmatmul.mubr.bf16.gmra.mrb[0].mxu0 %v257
        %v365 = vpop.f32.mrb[0].mxu0
        %v366 = vadd.f32 %v230, %v365
        %v367 = vpop.f32.mrb[0].mxu0
        %v368 = vpop.f32.mrb[0].mxu0
        %v369 = vadd.f32 %v230, %v368
        %v370 = vpop.f32.mrb[0].mxu0
        %371 = vmatprep.mubr.bf16.mxu0 0
        %372 = vmatmul.mubr.bf16.gmra.mrb[0].mxu0 %v260
        %v373 = vpop.f32.mrb[0].mxu0
        %v374 = vadd.f32 %v230, %v373
        %v375 = vpop.f32.mrb[0].mxu0
        %v376 = vpop.f32.mrb[0].mxu0
        %v377 = vadd.f32 %v230, %v376
        %v378 = vpop.f32.mrb[0].mxu0
        %379 = vmatprep.mubr.bf16.mxu0 0
        %380 = vmatmul.mubr.bf16.gmra.mrb[0].mxu0 %v263
        %v381 = vpop.f32.mrb[0].mxu0
        %v382 = vadd.f32 %v230, %v381
        %v383 = vpop.f32.mrb[0].mxu0
        %v384 = vpop.f32.mrb[0].mxu0
        %v385 = vadd.f32 %v230, %v384
        %v386 = vpop.f32.mrb[0].mxu0
        %387 = vmatprep.mubr.bf16.mxu0 0
        %388 = vmatmul.mubr.bf16.gmra.mrb[0].mxu0 %v266
        %v389 = vpop.f32.mrb[0].mxu0
        %v390 = vadd.f32 %v230, %v389
        %v391 = vpop.f32.mrb[0].mxu0
        %v392 = vpop.f32.mrb[0].mxu0
        %v393 = vadd.f32 %v230, %v392
        %v394 = vpop.f32.mrb[0].mxu0
        %395 = vmatprep.mubr.bf16.mxu0 0
        %396 = vmatmul.mubr.bf16.gmra.mrb[0].mxu0 %v269
        %v397 = vpop.f32.mrb[0].mxu0
        %v398 = vadd.f32 %v230, %v397
        %v399 = vpop.f32.mrb[0].mxu0
        %v400 = vpop.f32.mrb[0].mxu0
        %v401 = vadd.f32 %v230, %v400
        %v402 = vpop.f32.mrb[0].mxu0
        %403 = vmatprep.mubr.bf16.mxu0 0
        %404 = vmatmul.mubr.bf16.gmra.mrb[0].mxu0 %v272
        %v405 = vpop.f32.mrb[0].mxu0
        %v406 = vadd.f32 %v230, %v405
        %v407 = vpop.f32.mrb[0].mxu0
        %v408 = vpop.f32.mrb[0].mxu0
        %v409 = vadd.f32 %v230, %v408
        %v410 = vpop.f32.mrb[0].mxu0
        %411 = vmatprep.mubr.bf16.mxu0 0
        %412 = vmatmul.mubr.bf16.gmra.mrb[0].mxu0 %v275
        %v413 = vpop.f32.mrb[0].mxu0
        %v414 = vadd.f32 %v230, %v413
        %v415 = vpop.f32.mrb[0].mxu0
        %v416 = vpop.f32.mrb[0].mxu0
        %v417 = vadd.f32 %v230, %v416
        %v418 = vpop.f32.mrb[0].mxu0
        %419 = vmatprep.mubr.bf16.mxu0 0
        %420 = vmatmul.mubr.bf16.gmra.mrb[0].mxu0 %v278
        %v421 = vpop.f32.mrb[0].mxu0
        %v422 = vadd.f32 %v230, %v421
        %v423 = vpop.f32.mrb[0].mxu0
        %v424 = vpop.f32.mrb[0].mxu0
        %v425 = vadd.f32 %v230, %v424
        %v426 = vpop.f32.mrb[0].mxu0
        %427 = vmatprep.mubr.bf16.mxu0 0
        %428 = vmatmul.mubr.bf16.gmra.mrb[0].mxu0 %v281
        %v429 = vpop.f32.mrb[0].mxu0
        %v430 = vadd.f32 %v230, %v429
        %v431 = vpop.f32.mrb[0].mxu0
        %v432 = vpop.f32.mrb[0].mxu0
        %v433 = vadd.f32 %v230, %v432
        %v434 = vpop.f32.mrb[0].mxu0
        %435 = vmatprep.mubr.bf16.mxu0 0
        %436 = vmatmul.mubr.bf16.gmra.mrb[0].mxu0 %v284
        %v437 = vpop.f32.mrb[0].mxu0
        %v438 = vadd.f32 %v230, %v437
        %v439 = vpop.f32.mrb[0].mxu0
        %v440 = vpop.f32.mrb[0].mxu0
        %v441 = vadd.f32 %v230, %v440
        %v442 = vpop.f32.mrb[0].mxu0
        %443 = vmatprep.mubr.bf16.mxu0 0
        %444 = vmatmul.mubr.bf16.gmra.mrb[0].mxu0 %v287
        %v445 = vpop.f32.mrb[0].mxu0
        %v446 = vadd.f32 %v230, %v445
        %v447 = vpop.f32.mrb[0].mxu0
        %v448 = vpop.f32.mrb[0].mxu0
        %v449 = vadd.f32 %v230, %v448
        %v450 = vpop.f32.mrb[0].mxu0
        %451 = vmatprep.mubr.bf16.mxu0 0
        %452 = vmatmul.mubr.bf16.gmra.mrb[0].mxu0 %v290
        %v453 = vpop.f32.mrb[0].mxu0
        %v454 = vadd.f32 %v230, %v453
        %v455 = vpop.f32.mrb[0].mxu0
        %v456 = vpop.f32.mrb[0].mxu0
        %v457 = vadd.f32 %v230, %v456
        %v458 = vpop.f32.mrb[0].mxu0
        %459 = vdwg.mxu0
        %vm460 = vcmp.ge.f32.partialorder %v334, 0.0
        %vm461 = vcmp.ge.f32.partialorder %v337, 0.0
        %vm462 = vcmp.ge.f32.partialorder %v342, 0.0
        %vm463 = vcmp.ge.f32.partialorder %v345, 0.0
        %vm464 = vcmp.ge.f32.partialorder %v350, 0.0
        %vm465 = vcmp.ge.f32.partialorder %v353, 0.0
        %vm466 = vcmp.ge.f32.partialorder %v358, 0.0
        %vm467 = vcmp.ge.f32.partialorder %v361, 0.0
        %vm468 = vcmp.ge.f32.partialorder %v366, 0.0
        %vm469 = vcmp.ge.f32.partialorder %v369, 0.0
        %vm470 = vcmp.ge.f32.partialorder %v374, 0.0
        %vm471 = vcmp.ge.f32.partialorder %v377, 0.0
        %vm472 = vcmp.ge.f32.partialorder %v382, 0.0
        %vm473 = vcmp.ge.f32.partialorder %v385, 0.0
        %vm474 = vcmp.ge.f32.partialorder %v390, 0.0
        %vm475 = vcmp.ge.f32.partialorder %v393, 0.0
        %vm476 = vcmp.ge.f32.partialorder %v398, 0.0
        %vm477 = vcmp.ge.f32.partialorder %v401, 0.0
        %vm478 = vcmp.ge.f32.partialorder %v406, 0.0
        %vm479 = vcmp.ge.f32.partialorder %v409, 0.0
        %vm480 = vcmp.ge.f32.partialorder %v414, 0.0
        %vm481 = vcmp.ge.f32.partialorder %v417, 0.0
        %vm482 = vcmp.ge.f32.partialorder %v422, 0.0
        %vm483 = vcmp.ge.f32.partialorder %v425, 0.0
        %vm484 = vcmp.ge.f32.partialorder %v430, 0.0
        %vm485 = vcmp.ge.f32.partialorder %v433, 0.0
        %vm486 = vcmp.ge.f32.partialorder %v438, 0.0
        %vm487 = vcmp.ge.f32.partialorder %v441, 0.0
        %vm488 = vcmp.ge.f32.partialorder %v446, 0.0
        %vm489 = vcmp.ge.f32.partialorder %v449, 0.0
        %vm490 = vcmp.ge.f32.partialorder %v454, 0.0
        %vm491 = vcmp.ge.f32.partialorder %v457, 0.0
        %v492 = vmul.f32 %v334, 0.1
        %v493 = vmul.f32 %v337, 0.1
        %v494 = vmul.f32 %v342, 0.1
        %v495 = vmul.f32 %v345, 0.1
        %v496 = vmul.f32 %v350, 0.1
        %v497 = vmul.f32 %v353, 0.1
        %v498 = vmul.f32 %v358, 0.1
        %v499 = vmul.f32 %v361, 0.1
        %v500 = vmul.f32 %v366, 0.1
        %v501 = vmul.f32 %v369, 0.1
        %v502 = vmul.f32 %v374, 0.1
        %v503 = vmul.f32 %v377, 0.1
        %v504 = vmul.f32 %v382, 0.1
        %v505 = vmul.f32 %v385, 0.1
        %v506 = vmul.f32 %v390, 0.1
        %v507 = vmul.f32 %v393, 0.1
        %v508 = vmul.f32 %v398, 0.1
        %v509 = vmul.f32 %v401, 0.1
        %v510 = vmul.f32 %v406, 0.1
        %v511 = vmul.f32 %v409, 0.1
        %v512 = vmul.f32 %v414, 0.1
        %v513 = vmul.f32 %v417, 0.1
        %v514 = vmul.f32 %v422, 0.1
        %v515 = vmul.f32 %v425, 0.1
        %v516 = vmul.f32 %v430, 0.1
        %v517 = vmul.f32 %v433, 0.1
        %v518 = vmul.f32 %v438, 0.1
        %v519 = vmul.f32 %v441, 0.1
        %v520 = vmul.f32 %v446, 0.1
        %v521 = vmul.f32 %v449, 0.1
        %v522 = vmul.f32 %v454, 0.1
        %v523 = vmul.f32 %v457, 0.1
        %v524 = vsel %vm460, %v334, %v492
        %v525 = vsel %vm461, %v337, %v493
        %v526 = vsel %vm462, %v342, %v494
        %v527 = vsel %vm463, %v345, %v495
        %v528 = vsel %vm464, %v350, %v496
        %v529 = vsel %vm465, %v353, %v497
        %v530 = vsel %vm466, %v358, %v498
        %v531 = vsel %vm467, %v361, %v499
        %v532 = vsel %vm468, %v366, %v500
        %v533 = vsel %vm469, %v369, %v501
        %v534 = vsel %vm470, %v374, %v502
        %v535 = vsel %vm471, %v377, %v503
        %v536 = vsel %vm472, %v382, %v504
        %v537 = vsel %vm473, %v385, %v505
        %v538 = vsel %vm474, %v390, %v506
        %v539 = vsel %vm475, %v393, %v507
        %v540 = vsel %vm476, %v398, %v508
        %v541 = vsel %vm477, %v401, %v509
        %v542 = vsel %vm478, %v406, %v510
        %v543 = vsel %vm479, %v409, %v511
        %v544 = vsel %vm480, %v414, %v512
        %v545 = vsel %vm481, %v417, %v513
        %v546 = vsel %vm482, %v422, %v514
        %v547 = vsel %vm483, %v425, %v515
        %v548 = vsel %vm484, %v430, %v516
        %v549 = vsel %vm485, %v433, %v517
        %v550 = vsel %vm486, %v438, %v518
        %v551 = vsel %vm487, %v441, %v519
        %v552 = vsel %vm488, %v446, %v520
        %v553 = vsel %vm489, %v449, %v521
        %v554 = vsel %vm490, %v454, %v522
        %v555 = vsel %vm491, %v457, %v523
        %556 = vst [vmem:[%s164] sm:$0xff] %v524
        %557 = vst [vmem:[%s164 + $0x8] sm:$0xff] %v525
        %558 = vst [vmem:[%s164 + $0x10] sm:$0xff] %v526
        %559 = vst [vmem:[%s164 + $0x18] sm:$0xff] %v527
        %560 = vst [vmem:[%s164 + $0x20] sm:$0xff] %v528
        %561 = vst [vmem:[%s164 + $0x28] sm:$0xff] %v529
        %562 = vst [vmem:[%s164 + $0x30] sm:$0xff] %v530
        %563 = vst [vmem:[%s164 + $0x38] sm:$0xff] %v531
        %564 = vst [vmem:[%s164 + $0x40] sm:$0xff] %v532
        %565 = vst [vmem:[%s164 + $0x48] sm:$0xff] %v533
        %566 = vst [vmem:[%s164 + $0x50] sm:$0xff] %v534
        %567 = vst [vmem:[%s164 + $0x58] sm:$0xff] %v535
        %568 = vst [vmem:[%s164 + $0x60] sm:$0xff] %v536
        %569 = vst [vmem:[%s164 + $0x68] sm:$0xff] %v537
        %570 = vst [vmem:[%s164 + $0x70] sm:$0xff] %v538
        %571 = vst [vmem:[%s164 + $0x78] sm:$0xff] %v539
        %572 = vst [vmem:[%s164 + $0x80] sm:$0xff] %v540
        %573 = vst [vmem:[%s164 + $0x88] sm:$0xff] %v541
        %574 = vst [vmem:[%s164 + $0x90] sm:$0xff] %v542
        %575 = vst [vmem:[%s164 + $0x98] sm:$0xff] %v543
        %576 = vst [vmem:[%s164 + $0xa0] sm:$0xff] %v544
        %577 = vst [vmem:[%s164 + $0xa8] sm:$0xff] %v545
        %578 = vst [vmem:[%s164 + $0xb0] sm:$0xff] %v546
        %579 = vst [vmem:[%s164 + $0xb8] sm:$0xff] %v547
        %580 = vst [vmem:[%s164 + $0xc0] sm:$0xff] %v548
        %581 = vst [vmem:[%s164 + $0xc8] sm:$0xff] %v549
        %582 = vst [vmem:[%s164 + $0xd0] sm:$0xff] %v550
        %583 = vst [vmem:[%s164 + $0xd8] sm:$0xff] %v551
        %584 = vst [vmem:[%s164 + $0xe0] sm:$0xff] %v552
        %585 = vst [vmem:[%s164 + $0xe8] sm:$0xff] %v553
        %586 = vst [vmem:[%s164 + $0xf0] sm:$0xff] %v554
        %587 = vst [vmem:[%s164 + $0xf8] sm:$0xff] %v555
        %s588 = sand.u32 %s93, 1
        %s589 = scalar_lea.sflag [#allocation3], %s588
        %s590 = sand.u32 %s93, 1
        %s591 = smul.addr %s590, 256
        %s592 = scalar_lea.vmem [#allocation2], %s591
        // Predicated region
        $region33: #{tpu_custom_call.1} parent=31 // pred_check
          %p593 = pneg %p103
        $region34: #{tpu_custom_call.1} parent=31 // pred_check_branch
          %595 = sbr.rel (%p593) target = $region36
        $region35: #{tpu_custom_call.1} parent=31 // pred_region
          %s596 = smul.u32 32, %s17
          %s598 = ssub.s32 4096, 4096
          %599 = vsyncadd %s589, %s598
          %s600 = smul.addr %s596, 128
          %s601 = scalar_lea.hbm %s3, %s600
          %s602 = sshll.u32 %s592, 4
          %s603 = int_to_ptr.vmem [resolvable:$true] %s602
          %608 = dma.vmem_to_hbm [thread:$0]  %s603, 4096, %s601, %s589, 128, 128, 8
        $region36: #{tpu_custom_call.1} parent=31 // pred_fallthru
          _
      $region32: #{tpu_custom_call.1} parent=5 // pred_fallthru
        _
      %p609 = scmp.le.s32.totalorder 2, %s12
      // Predicated region
      $region37: #{tpu_custom_call.1} parent=5 // pred_check
        %p610 = pneg %p609
      $region38: #{tpu_custom_call.1} parent=5 // pred_check_branch
        %612 = sbr.rel (%p610) target = $region40
      $region39: #{tpu_custom_call.1} parent=5 // pred_region
        %s613 = ssub.s32 %s12, 2
        // Predicated region
        $region41: #{tpu_custom_call.1} parent=39 // pred_check
          %p614 = pneg %p109
        $region42: #{tpu_custom_call.1} parent=39 // pred_check_branch
          %616 = sbr.rel (%p614) target = $region44
        $region43: #{tpu_custom_call.1} parent=39 // pred_region
          %s617 = sand.u32 %s94, 1
          %s618 = scalar_lea.sflag [#allocation3], %s617
          %s619 = sand.u32 %s94, 1
          %s620 = smul.addr %s619, 256
          %s621 = scalar_lea.vmem [#allocation2], %s620
          %622 = dma.done %s618, 4096
        $region44: #{tpu_custom_call.1} parent=39 // pred_fallthru
          _
      $region40: #{tpu_custom_call.1} parent=5 // pred_fallthru
        _
    $region6: #{tpu_custom_call.1} parent=1 // loop_footer
      %s16 = sadd.s32 1, %s12
    $region7: #{tpu_custom_call.1} parent=1 // loop_footer_branch
      %11 = sbr.rel target = $region3
    $region8: #{tpu_custom_call.1} parent=1 // loop_exit
      _
    %623 = vsyncpa [#allocation3], 1
    %s624 = scalar_lea.sflag [#allocation3], 1
    %625 = vsyncpa %s624, 1

</llo_original>
